<compile_context>
chip_gen: v7x
topology: tpu7x:2x2x1
jax: 0.10.0
libtpu: 0.0.40
codegen_flags: <defaults>
</compile_context>

<pallas_src>
import math

import jax
import jax.numpy as jnp
from jax.experimental import pallas as pl
from jax.experimental.pallas import tpu as pltpu


def _round_up(x: int, m: int) -> int:
    return ((x + m - 1) // m) * m


def _round_down(x: int, m: int) -> int:
    return (x // m) * m


def _pred_layer_kernel(x_ref, wt_ref, o_ref):
    # x_ref : (TB, inp)     activation tile (double-buffered over the grid)
    # wt_ref: (inp, out_p)  transposed weight, VMEM-resident across grid steps
    # o_ref : (TB, out_p)   lane-dense output tile
    o_ref[...] = jnp.dot(
        x_ref[...], wt_ref[...], preferred_element_type=jnp.float32
    ).astype(o_ref.dtype)


def tabnet_pred_layer(
    res: jax.Array,
    m_loss: jax.Array,
    wt: jax.Array,
    *,
    tb_max: int = 1024,
    vmem_budget_bytes: int = 24 << 20,
):
    """TabNetPredLayer forward.

    res   : (B, inp) activations from the TabNet body.
    m_loss: scalar sparse-regularization factor (passed through untouched).
    wt    : (inp, out) PRE-TRANSPOSED nn.Linear weight (i.e. W.T), so no
            per-call transpose is needed.
    """
    B, inp = res.shape
    inp_w, out = wt.shape
    assert inp == inp_w, "weight / input feature mismatch"

    itemsize = jnp.dtype(res.dtype).itemsize

    # Lane-dense output: pad the tiny output feature dim up to a multiple of
    # 128 (zero columns), slice off after the kernel.
    out_p = _round_up(out, 128)
    wt_p = wt if out_p == out else jnp.pad(wt, ((0, 0), (0, out_p - out)))

    # Largest batch tile that fits the VMEM budget:
    #   2x (TB, inp) input buffers + 2x (TB, out_p) output buffers
    #   + 2x (inp, out_p) resident weight  (all double-buffered by BlockSpec).
    weight_bytes = 2 * inp * out_p * itemsize
    per_row_bytes = 2 * (inp + out_p) * itemsize
    tb = (vmem_budget_bytes - weight_bytes) // per_row_bytes
    tb = min(_round_down(max(tb, 8), 8), _round_down(tb_max, 8), _round_up(B, 8))
    tb = max(tb, 8)

    grid = (pl.cdiv(B, tb),)

    cost = pl.CostEstimate(
        flops=2 * B * inp * out_p,
        transcendentals=0,
        bytes_accessed=itemsize * (B * inp + inp * out_p + B * out_p),
    )

    pred_p = pl.pallas_call(
        _pred_layer_kernel,
        out_shape=jax.ShapeDtypeStruct((B, out_p), res.dtype),
        grid_spec=pl.GridSpec(
            grid=grid,
            in_specs=[
                # Activations: stream batch tiles.
                pl.BlockSpec((tb, inp), lambda i: (i, 0)),
                # Weight: same block every step -> stays VMEM-resident.
                pl.BlockSpec((inp, out_p), lambda i: (0, 0)),
            ],
            out_specs=pl.BlockSpec((tb, out_p), lambda i: (i, 0)),
        ),
        compiler_params=pltpu.CompilerParams(
            dimension_semantics=("parallel",),
        ),
        cost_estimate=cost,
    )(res, wt_p)

    pred = pred_p if out_p == out else pred_p[:, :out]

    # M_loss is passed through untouched, exactly as in the PyTorch module.
    return pred, m_loss


def init_non_glu_weight_t(key, inp: int, out: int) -> jax.Array:
    """xavier_normal_ with TabNet's non-GLU gain, emitted directly in the
    pre-transposed (inp, out) layout (== nn.Linear weight (out, inp) .T)."""
    gain = math.sqrt((inp + out) / math.sqrt(4 * inp))
    std = gain * math.sqrt(2.0 / (inp + out))
    return std * jax.random.normal(key, (inp, out), dtype=jnp.float32)


if __name__ == "__main__":
    key = jax.random.PRNGKey(0)
    k_w, k_x, k_l = jax.random.split(key, 3)

    batch, inp, out = 8, 32, 4

    wt = init_non_glu_weight_t(k_w, inp, out)                  # (inp, out) pre-transposed
    res = jax.random.normal(k_x, (batch, inp), jnp.float32)    # last-layer activations
    m_loss = jax.random.uniform(k_l, (), jnp.float32)          # sparse reg factor

    pred, m_loss_out = tabnet_pred_layer(res, m_loss, wt)
    jax.block_until_ready((pred, m_loss_out))

    # Sanity check against plain-JAX reference of the PyTorch forward.
    ref = res @ wt                                             # == res @ W.T
    assert pred.shape == (batch, out)
    assert jnp.allclose(pred, ref, atol=1e-5, rtol=1e-5)
    assert jnp.array_equal(m_loss_out, m_loss)

    print("KERNEL_OK")
</pallas_src>

<mosaic_0001>
module attributes {stable_mosaic.version = 11 : i64} {
  func.func @_pred_layer_kernel(%arg0: i32, %arg1: memref<8x32xf32, #tpu.memory_space<vmem>>, %arg2: memref<32x128xf32, #tpu.memory_space<vmem>>, %arg3: memref<8x128xf32, #tpu.memory_space<vmem>>) attributes {dimension_semantics = [#tpu.dimension_semantics<parallel>], iteration_bounds = array<i64: 1>, scalar_prefetch = 0 : i64, scratch_operands = 0 : i64, tpu.core_type = #tpu.core_type<tc>, window_params = [{transform_indices = @transform_0, window_bounds = array<i64: 8, 32>}, {pipeline_mode = #tpu.pipeline_mode<synchronous>, transform_indices = @transform_1, window_bounds = array<i64: 32, 128>}, {transform_indices = @transform_2, window_bounds = array<i64: 8, 128>}]} {
    %c0 = arith.constant 0 : index
    %c0_0 = arith.constant 0 : index
    %0 = vector.load %arg1[%c0, %c0_0] : memref<8x32xf32, #tpu.memory_space<vmem>>, vector<8x32xf32>
    %c0_1 = arith.constant 0 : index
    %c0_2 = arith.constant 0 : index
    %1 = vector.load %arg2[%c0_1, %c0_2] : memref<32x128xf32, #tpu.memory_space<vmem>>, vector<32x128xf32>
    %cst = arith.constant dense<0.000000e+00> : vector<8x128xf32>
    %2 = tpu.matmul %0, %1, %cst {dimension_numbers = #tpu.dot_dimension_numbers<[1], [0], [0], [1], [0, 0, 1, 1], [], []>} : vector<8x32xf32>, vector<32x128xf32>, vector<8x128xf32> -> vector<8x128xf32>
    %c0_3 = arith.constant 0 : index
    %c0_4 = arith.constant 0 : index
    %3 = vector.load %arg3[%c0_3, %c0_4] : memref<8x128xf32, #tpu.memory_space<vmem>>, vector<8x128xf32>
    tpu.vector_store %arg3[%c0_3, %c0_4], %2 {strides = array<i32>} : memref<8x128xf32, #tpu.memory_space<vmem>>, vector<8x128xf32>,
    return
  }
  func.func @transform_0(%arg0: i32) -> (i32, i32) {
    %c0_i32 = arith.constant 0 : i32
    %c0_i32_0 = arith.constant 0 : i32
    return %arg0, %c0_i32 : i32, i32
  }
  func.func @transform_1(%arg0: i32) -> (i32, i32) {
    %c0_i32 = arith.constant 0 : i32
    %c0_i32_0 = arith.constant 0 : i32
    %c0_i32_1 = arith.constant 0 : i32
    return %c0_i32, %c0_i32_0 : i32, i32
  }
  func.func @transform_2(%arg0: i32) -> (i32, i32) {
    %c0_i32 = arith.constant 0 : i32
    %c0_i32_0 = arith.constant 0 : i32
    return %arg0, %c0_i32 : i32, i32
  }
}

</mosaic_0001>

<llo_original>
// kernel: tpu_custom_call.1
$region0: #{tpu_custom_call.1}
  #allocation0 [shape = 'u32[]', space=smem, size = 0x4, offset = 0x4, fixed_abs, tag = 'smem constant byte address 0x4 - core index']
  #allocation1 [shape = 'u32[144,128]{1,0:T(1,128)}', space=vmem, size = 0x12000, scoped, tag = 'internal scratch']
  %s0 = inlined_call_operand.hbm [shape: f32[8,32], index: 0, kind: input, shape index: {}]
  %s1 = inlined_call_operand.hbm [shape: f32[32,128], index: 1, kind: input, shape index: {}]
  %s2 = inlined_call_operand.hbm [shape: f32[8,128], index: 2, kind: output, shape index: {}]
  %s3 = sld [smem:[#allocation0]]
  $region26: #{tpu_custom_call.1} parent=0
    _
  %s5 = ssub.s32 1, %s3
  %s6 = scalar_select 0, %s5, %s3
  $region1: #{tpu_custom_call.1} parent=0
    #allocation2 [shape = 'u8[4096]{0}', space=vmem, size = 0x1000, scoped, tag = 'input window, operand 0, single buffered']
    #allocation3 [shape = 's32[1]{0}', space=sflag, size = 0x4, scoped, tag = 'scoped memory for tpu_custom_call.1']
    #allocation4 [shape = 's32[1]{0}', space=sflag, size = 0x4, scoped, tag = 'scoped memory for tpu_custom_call.1']
    #allocation5 [shape = 'u8[16384]{0}', space=vmem, size = 0x4000, scoped, tag = 'input window, operand 1, single buffered']
    #allocation6 [shape = 's32[1]{0}', space=sflag, size = 0x4, scoped, tag = 'scoped memory for tpu_custom_call.1']
    #allocation7 [shape = 'u8[4096]{0}', space=vmem, size = 0x1000, scoped, tag = 'output window, operand 0, single buffered']
    %7 = vsyncpa [#allocation3], 0
    %8 = vsyncpa [#allocation6], 0
    %9 = vsyncpa [#allocation4], 0
    // Predicated region
    $region2: #{tpu_custom_call.1} parent=1 // pred_check
      _
    $region3: #{tpu_custom_call.1} parent=1 // pred_check_branch
      %11 = sbr.rel (0) target = $region5
    $region4: #{tpu_custom_call.1} parent=1 // pred_region
      %s13 = ssub.s32 128, 128
      %14 = vsyncadd [#allocation3], %s13
      %s16 = sshll.u32 [#allocation2], 4
      %s17 = int_to_ptr.vmem [resolvable:$true] %s16
      %19 = dma.hbm_to_vmem [thread:$0]  %s0, 128, %s17, [#allocation3]
    $region5: #{tpu_custom_call.1} parent=1 // pred_fallthru
      _
    // Predicated region
    $region6: #{tpu_custom_call.1} parent=1 // pred_check
      _
    $region7: #{tpu_custom_call.1} parent=1 // pred_check_branch
      %21 = sbr.rel (0) target = $region9
    $region8: #{tpu_custom_call.1} parent=1 // pred_region
      %s23 = ssub.s32 512, 512
      %24 = vsyncadd [#allocation6], %s23
      %s25 = sshll.u32 [#allocation5], 4
      %s26 = int_to_ptr.vmem [resolvable:$true] %s25
      %31 = dma.hbm_to_vmem [thread:$0]  %s1, 512, %s26, [#allocation6], 128, 128, 8
    $region9: #{tpu_custom_call.1} parent=1 // pred_fallthru
      _
    // Predicated region
    $region10: #{tpu_custom_call.1} parent=1 // pred_check
      _
    $region11: #{tpu_custom_call.1} parent=1 // pred_check_branch
      %33 = sbr.rel (0) target = $region13
    $region12: #{tpu_custom_call.1} parent=1 // pred_region
      %34 = dma.done [#allocation3], 128
    $region13: #{tpu_custom_call.1} parent=1 // pred_fallthru
      _
    // Predicated region
    $region14: #{tpu_custom_call.1} parent=1 // pred_check
      _
    $region15: #{tpu_custom_call.1} parent=1 // pred_check_branch
      %36 = sbr.rel (0) target = $region17
    $region16: #{tpu_custom_call.1} parent=1 // pred_region
      %37 = dma.done [#allocation6], 512
    $region17: #{tpu_custom_call.1} parent=1 // pred_fallthru
      _
    %v38 = vld [vmem:[#allocation2] sm:$0xff]
    %v39 = vld [vmem:[#allocation5] sm:$0xff]
    %v40 = vld [vmem:[#allocation5 + $0x8] sm:$0xff]
    %v41 = vld [vmem:[#allocation5 + $0x10] sm:$0xff]
    %v42 = vld [vmem:[#allocation5 + $0x18] sm:$0xff]
    %vm43 = vcmask 261120
    %v45 = vsel %vm43, %v38, 0
    %47 = vmatprep.subr.mxu0 0.0
    %48 = vmatpush1.msra.mxu0 %v39
    %49 = vmatprep.subr.mxu0 0.0
    %50 = vmatpush1.msra.mxu0 %v40
    %51 = vmatprep.subr.mxu0 0.0
    %52 = vmatpush1.msra.mxu0 %v41
    %53 = vmatprep.subr.mxu0 0.0
    %54 = vmatpush1.msra.mxu0 %v42
    %55 = vmatprep.subr.mxu0 0.0
    %56 = vmatpush1.msra.mxu0 0.0
    %57 = vmatprep.subr.mxu0 0.0
    %58 = vmatpush1.msra.mxu0 0.0
    %59 = vmatprep.subr.mxu0 0.0
    %60 = vmatpush1.msra.mxu0 0.0
    %61 = vmatprep.subr.mxu0 0.0
    %62 = vmatpush1.msra.mxu0 0.0
    %63 = vmatprep.subr.mxu0 0.0
    %64 = vmatpush1.msra.mxu0 0.0
    %65 = vmatprep.subr.mxu0 0.0
    %66 = vmatpush1.msra.mxu0 0.0
    %67 = vmatprep.subr.mxu0 0.0
    %68 = vmatpush1.msra.mxu0 0.0
    %69 = vmatprep.subr.mxu0 0.0
    %70 = vmatpush1.msra.mxu0 0.0
    %71 = vmatprep.subr.mxu0 0.0
    %72 = vmatpush1.msra.mxu0 0.0
    %73 = vmatprep.subr.mxu0 0.0
    %74 = vmatpush1.msra.mxu0 0.0
    %75 = vmatprep.subr.mxu0 0.0
    %76 = vmatpush1.msra.mxu0 0.0
    %77 = vmatprep.subr.mxu0 0.0
    %78 = vmatpush1.msra.mxu0 0.0
    %79 = vmatprep.subr.mxu0 0.0
    %80 = vmatpush1.msra.mxu0 0.0
    %81 = vmatprep.subr.mxu0 0.0
    %82 = vmatpush1.msra.mxu0 0.0
    %83 = vmatprep.subr.mxu0 0.0
    %84 = vmatpush1.msra.mxu0 0.0
    %85 = vmatprep.subr.mxu0 0.0
    %86 = vmatpush1.msra.mxu0 0.0
    %87 = vmatprep.subr.mxu0 0.0
    %88 = vmatpush1.msra.mxu0 0.0
    %89 = vmatprep.subr.mxu0 0.0
    %90 = vmatpush1.msra.mxu0 0.0
    %91 = vmatprep.subr.mxu0 0.0
    %92 = vmatpush1.msra.mxu0 0.0
    %93 = vmatprep.subr.mxu0 0.0
    %94 = vmatpush1.msra.mxu0 0.0
    %95 = vmatprep.subr.mxu0 0.0
    %96 = vmatpush1.msra.mxu0 0.0
    %97 = vmatprep.subr.mxu0 0.0
    %98 = vmatpush1.msra.mxu0 0.0
    %99 = vmatprep.subr.mxu0 0.0
    %100 = vmatpush1.msra.mxu0 0.0
    %101 = vmatprep.subr.mxu0 0.0
    %102 = vmatpush1.msra.mxu0 0.0
    %103 = vmatprep.subr.mxu0 0.0
    %104 = vmatpush1.msra.mxu0 0.0
    %105 = vmatprep.subr.mxu0 0.0
    %106 = vmatpush1.msra.mxu0 0.0
    %107 = vmatprep.subr.mxu0 0.0
    %108 = vmatpush1.msra.mxu0 0.0
    %109 = vmatprep.subr.mxu0 0.0
    %110 = vmatpush1.msra.mxu0 0.0
    %111 = vmatprep.mubr.f32.mxu0 0.0
    %112 = vmatmul.mubr.f32.gmra.mrb[0].mxu0 %v45
    %v113 = vpop.f32.mrb[0].mxu0
    %v114 = vadd.f32 0.0, %v113
    %v115 = vpop.f32.mrb[0].mxu0
    %116 = vdwg.mxu0
    %117 = vst [vmem:[#allocation7] sm:$0xff] %v114
    // Predicated region
    $region18: #{tpu_custom_call.1} parent=1 // pred_check
      _
    $region19: #{tpu_custom_call.1} parent=1 // pred_check_branch
      %119 = sbr.rel (0) target = $region21
    $region20: #{tpu_custom_call.1} parent=1 // pred_region
      %s121 = ssub.s32 128, 128
      %122 = vsyncadd [#allocation4], %s121
      %s124 = sshll.u32 [#allocation7], 4
      %s125 = int_to_ptr.vmem [resolvable:$true] %s124
      %127 = dma.vmem_to_hbm [thread:$0]  %s125, 128, %s2, [#allocation4]
    $region21: #{tpu_custom_call.1} parent=1 // pred_fallthru
      _
    // Predicated region
    $region22: #{tpu_custom_call.1} parent=1 // pred_check
      _
    $region23: #{tpu_custom_call.1} parent=1 // pred_check_branch
      %129 = sbr.rel (0) target = $region25
    $region24: #{tpu_custom_call.1} parent=1 // pred_region
      %130 = dma.done [#allocation4], 128
    $region25: #{tpu_custom_call.1} parent=1 // pred_fallthru
      _
    %131 = vsyncpa [#allocation3], 1
    %132 = vsyncpa [#allocation6], 1
    %133 = vsyncpa [#allocation4], 1

</llo_original>
